<compile_context>
chip_gen: v6e
topology: v6e:2x2x1
jax: 0.10.0
libtpu: 0.0.40
codegen_flags: <defaults>
</compile_context>

<pallas_src>
import functools

import jax
import jax.numpy as jnp
from jax import lax
from jax.experimental import pallas as pl
from jax.experimental.pallas import tpu as pltpu


_COMPILER_PARAMS = pltpu.CompilerParams(
    # No reduction axis: every (a, b) grid point writes a disjoint output block.
    dimension_semantics=("parallel", "parallel"),
    # Blocks are tiny (full extents of small dims); 32 MiB is ample on v5e/v6e
    # (128 MiB physical VMEM) and within v7x's 64 MiB physical VMEM.
    vmem_limit_bytes=32 * 1024 * 1024,
)


def _s2conv_kernel(x_ref, w_ref, o_ref, *, n_batch, b_out):
    """General degree (l > 0).

    x_ref: (N, I, L)   w_ref: (O, I, K)   o_ref: (N, O, L, K),   K == L == 2l+1.
    """
    # Static unroll: the x tile and the weight tile stay resident in VMEM for the
    # whole batch.  (For very large N, tile N with an extra innermost grid axis
    # instead of fully unrolling.)
    for n in range(n_batch):
        x_n = x_ref[n]                            # (I, L)
        for o in range(b_out):
            # Contract over I: (I, L)^T @ (I, K) -> (L, K); transposed LHS is
            # handled by the MXU, no wrapper transpose of x needed.
            acc = lax.dot_general(
                x_n, w_ref[o],
                dimension_numbers=(((0,), (0,)), ((), ())),
                preferred_element_type=jnp.float32)
            o_ref[n, o, :, :] = acc.astype(o_ref.dtype)


def _s2conv_l0_kernel(x_ref, w_ref, b_ref, o_ref, *, n_batch):
    """Degree l == 0 (L = K = 1), with bias.

    x_ref: (N, 1, I)   w_ref: (I, O)   b_ref: (1, O) f32   o_ref: (N, 1, O).
    """
    w = w_ref[...]                                # (I, O), loaded once per block
    b = b_ref[...]                                # (1, O), f32
    for n in range(n_batch):
        acc = jnp.dot(x_ref[n], w, preferred_element_type=jnp.float32) + b  # (1, O)
        o_ref[n, :, :] = acc.astype(o_ref.dtype)


def _s2conv_degree(x_l, w_l):
    """x_l: (N,A,B,I,L), w_l: (A,B,I,O,K) with K == L  ->  (N,A,B,O,L,K)."""
    N, A, B, I, L = x_l.shape
    O, K = w_l.shape[3], w_l.shape[4]
    assert K == L, (K, L)

    # Re-layout only the *small* weight tensor so the kernel can grab a dense
    # (I, K) tile per output channel; x and the output keep their native layouts
    # (no extra HBM pass over the big tensors).
    w_r = jnp.transpose(w_l, (0, 1, 3, 2, 4))     # (A, B, O, I, K)

    return pl.pallas_call(
        functools.partial(_s2conv_kernel, n_batch=N, b_out=O),
        out_shape=jax.ShapeDtypeStruct((N, A, B, O, L, K), x_l.dtype),
        grid=(A, B),
        in_specs=[
            pl.BlockSpec((N, None, None, I, L), lambda a, b: (0, a, b, 0, 0)),
            pl.BlockSpec((None, None, O, I, K), lambda a, b: (a, b, 0, 0, 0)),
        ],
        out_specs=pl.BlockSpec((N, None, None, O, L, K),
                               lambda a, b: (0, a, b, 0, 0, 0)),
        compiler_params=_COMPILER_PARAMS,
    )(x_l, w_r)


def _s2conv_degree0(x0, w0, bias):
    """x0: (N,A,B,I,1), w0: (A,B,I,O,1), bias: (1,A,B,O,1,1) -> (N,A,B,O,1,1)."""
    N, A, B, I, _ = x0.shape
    O = w0.shape[3]

    # All re-layouts below preserve the flat element order (free reshapes):
    x_r = x0.reshape(N, A, B, 1, I)               # move the unit SH dim
    w_r = w0.reshape(A, B, I, O)                  # drop the trailing unit dim
    b_r = bias[0, :, :, :, 0, 0].reshape(A, B, 1, O).astype(jnp.float32)

    out = pl.pallas_call(
        functools.partial(_s2conv_l0_kernel, n_batch=N),
        out_shape=jax.ShapeDtypeStruct((N, A, B, 1, O), x0.dtype),
        grid=(A, B),
        in_specs=[
            pl.BlockSpec((N, None, None, 1, I), lambda a, b: (0, a, b, 0, 0)),
            pl.BlockSpec((None, None, I, O), lambda a, b: (a, b, 0, 0)),
            pl.BlockSpec((None, None, 1, O), lambda a, b: (a, b, 0, 0)),
        ],
        out_specs=pl.BlockSpec((N, None, None, 1, O), lambda a, b: (0, a, b, 0, 0)),
        compiler_params=_COMPILER_PARAMS,
    )(x_r, w_r, b_r)
    # (N,A,B,1,O) and (N,A,B,O,1,1) share the same flat element order -> free.
    return out.reshape(N, A, B, O, 1, 1)


def s2_convolution(x, weights, bias, l_in, symmetric=True):
    """Pallas equivalent of S2Convolution.forward.

    x:       dict {l: (N, ti_n, te_n, b_in, 2l+1)}
    weights: dict {l: (ti_n, te_n, b_in, b_out, 2l+1)}
    bias:    (1, ti_n, te_n, b_out, 1, 1), added for l == 0 only.
    """
    step = 2 if symmetric else 1
    rh = {}
    for l in range(0, l_in + 1, step):
        if l == 0:
            rh[l] = _s2conv_degree0(x[0], weights[0], bias)
        else:
            rh[l] = _s2conv_degree(x[l], weights[l])
    return rh


if __name__ == "__main__":
    # Small shapes consistent with the module hyperparameters.
    ti_n, te_n, l_in, b_in, b_out = 2, 3, 4, 4, 3
    symmetric = True
    N = 2
    step = 2 if symmetric else 1

    key = jax.random.PRNGKey(0)
    weights, x = {}, {}
    for l in range(0, l_in + 1, step):
        n_sh = 2 * l + 1
        key, kw, kx = jax.random.split(key, 3)
        weights[l] = jax.random.uniform(
            kw, (ti_n, te_n, b_in, b_out, n_sh), dtype=jnp.float32) * 0.1
        x[l] = jax.random.normal(kx, (N, ti_n, te_n, b_in, n_sh), dtype=jnp.float32)
    key, kb = jax.random.split(key)
    # Non-zero bias so the l == 0 bias path is actually exercised.
    bias = jax.random.normal(kb, (1, ti_n, te_n, b_out, 1, 1), dtype=jnp.float32) * 0.1

    out = s2_convolution(x, weights, bias, l_in, symmetric)
    jax.block_until_ready(out)

    # Check against the exact einsum semantics of the torch module.
    for l in range(0, l_in + 1, step):
        ref = jnp.einsum('nabil,abiok->nabolk', x[l], weights[l])
        if l == 0:
            ref = ref + bias
        assert out[l].shape == ref.shape, (l, out[l].shape, ref.shape)
        assert out[l].dtype == jnp.float32
        assert jnp.allclose(out[l], ref, atol=1e-5, rtol=1e-5), f"mismatch at degree {l}"

    print("KERNEL_OK")
</pallas_src>

<mosaic_0001>
module attributes {stable_mosaic.version = 11 : i64} {
  func.func @_s2conv_l0_kernel(%arg0: i32, %arg1: i32, %arg2: memref<2x1x1x1x4xf32, #tpu.memory_space<vmem>>, %arg3: memref<1x1x4x3xf32, #tpu.memory_space<vmem>>, %arg4: memref<1x1x1x3xf32, #tpu.memory_space<vmem>>, %arg5: memref<2x1x1x1x3xf32, #tpu.memory_space<vmem>>) attributes {dimension_semantics = [#tpu.dimension_semantics<parallel>, #tpu.dimension_semantics<parallel>], iteration_bounds = array<i64: 2, 3>, scalar_prefetch = 0 : i64, scratch_operands = 0 : i64, tpu.core_type = #tpu.core_type<tc>, window_params = [{transform_indices = @transform_0, window_bounds = array<i64: 2, 1, 1, 1, 4>}, {transform_indices = @transform_1, window_bounds = array<i64: 1, 1, 4, 3>}, {transform_indices = @transform_2, window_bounds = array<i64: 1, 1, 1, 3>}, {transform_indices = @transform_3, window_bounds = array<i64: 2, 1, 1, 1, 3>}]} {
    %c0 = arith.constant 0 : index
    %c0_0 = arith.constant 0 : index
    %c0_1 = arith.constant 0 : index
    %c0_2 = arith.constant 0 : index
    %0 = vector.load %arg3[%c0, %c0_0, %c0_1, %c0_2] : memref<1x1x4x3xf32, #tpu.memory_space<vmem>>, vector<1x1x4x3xf32>
    %1 = vector.shape_cast %0 : vector<1x1x4x3xf32> to vector<4x3xf32>
    %c0_3 = arith.constant 0 : index
    %c0_4 = arith.constant 0 : index
    %c0_5 = arith.constant 0 : index
    %c0_6 = arith.constant 0 : index
    %2 = vector.load %arg4[%c0_3, %c0_4, %c0_5, %c0_6] : memref<1x1x1x3xf32, #tpu.memory_space<vmem>>, vector<1x1x1x3xf32>
    %3 = vector.shape_cast %2 : vector<1x1x1x3xf32> to vector<1x3xf32>
    %c0_7 = arith.constant 0 : index
    %c0_8 = arith.constant 0 : index
    %c0_9 = arith.constant 0 : index
    %c0_10 = arith.constant 0 : index
    %c0_11 = arith.constant 0 : index
    %4 = vector.load %arg2[%c0_7, %c0_8, %c0_9, %c0_10, %c0_11] : memref<2x1x1x1x4xf32, #tpu.memory_space<vmem>>, vector<1x1x1x1x4xf32>
    %5 = vector.shape_cast %4 : vector<1x1x1x1x4xf32> to vector<1x4xf32>
    %cst = arith.constant dense<0.000000e+00> : vector<1x3xf32>
    %6 = tpu.matmul %5, %1, %cst {dimension_numbers = #tpu.dot_dimension_numbers<[1], [0], [0], [1], [0, 0, 1, 1], [], []>} : vector<1x4xf32>, vector<4x3xf32>, vector<1x3xf32> -> vector<1x3xf32>
    %7 = arith.addf %6, %3 : vector<1x3xf32>
    %c0_12 = arith.constant 0 : index
    %c0_13 = arith.constant 0 : index
    %c0_14 = arith.constant 0 : index
    %c0_15 = arith.constant 0 : index
    %c0_16 = arith.constant 0 : index
    %8 = vector.load %arg5[%c0_12, %c0_13, %c0_14, %c0_15, %c0_16] : memref<2x1x1x1x3xf32, #tpu.memory_space<vmem>>, vector<1x1x1x1x3xf32>
    %9 = vector.shape_cast %8 : vector<1x1x1x1x3xf32> to vector<1x3xf32>
    %10 = vector.shape_cast %7 : vector<1x3xf32> to vector<1x1x1x1x3xf32>
    tpu.vector_store %arg5[%c0_12, %c0_13, %c0_14, %c0_15, %c0_16], %10 {strides = array<i32>} : memref<2x1x1x1x3xf32, #tpu.memory_space<vmem>>, vector<1x1x1x1x3xf32>,
    %c1 = arith.constant 1 : index
    %c0_17 = arith.constant 0 : index
    %c0_18 = arith.constant 0 : index
    %c0_19 = arith.constant 0 : index
    %c0_20 = arith.constant 0 : index
    %11 = vector.load %arg2[%c1, %c0_17, %c0_18, %c0_19, %c0_20] : memref<2x1x1x1x4xf32, #tpu.memory_space<vmem>>, vector<1x1x1x1x4xf32>
    %12 = vector.shape_cast %11 : vector<1x1x1x1x4xf32> to vector<1x4xf32>
    %cst_21 = arith.constant dense<0.000000e+00> : vector<1x3xf32>
    %13 = tpu.matmul %12, %1, %cst_21 {dimension_numbers = #tpu.dot_dimension_numbers<[1], [0], [0], [1], [0, 0, 1, 1], [], []>} : vector<1x4xf32>, vector<4x3xf32>, vector<1x3xf32> -> vector<1x3xf32>
    %14 = arith.addf %13, %3 : vector<1x3xf32>
    %c1_22 = arith.constant 1 : index
    %c0_23 = arith.constant 0 : index
    %c0_24 = arith.constant 0 : index
    %c0_25 = arith.constant 0 : index
    %c0_26 = arith.constant 0 : index
    %15 = vector.load %arg5[%c1_22, %c0_23, %c0_24, %c0_25, %c0_26] : memref<2x1x1x1x3xf32, #tpu.memory_space<vmem>>, vector<1x1x1x1x3xf32>
    %16 = vector.shape_cast %15 : vector<1x1x1x1x3xf32> to vector<1x3xf32>
    %17 = vector.shape_cast %14 : vector<1x3xf32> to vector<1x1x1x1x3xf32>
    tpu.vector_store %arg5[%c1_22, %c0_23, %c0_24, %c0_25, %c0_26], %17 {strides = array<i32>} : memref<2x1x1x1x3xf32, #tpu.memory_space<vmem>>, vector<1x1x1x1x3xf32>,
    return
  }
  func.func @transform_0(%arg0: i32, %arg1: i32) -> (i32, i32, i32, i32, i32) {
    %c0_i32 = arith.constant 0 : i32
    %c0_i32_0 = arith.constant 0 : i32
    %c0_i32_1 = arith.constant 0 : i32
    %c0_i32_2 = arith.constant 0 : i32
    return %c0_i32, %arg0, %arg1, %c0_i32_0, %c0_i32_1 : i32, i32, i32, i32, i32
  }
  func.func @transform_1(%arg0: i32, %arg1: i32) -> (i32, i32, i32, i32) {
    %c0_i32 = arith.constant 0 : i32
    %c0_i32_0 = arith.constant 0 : i32
    %c0_i32_1 = arith.constant 0 : i32
    return %arg0, %arg1, %c0_i32, %c0_i32_0 : i32, i32, i32, i32
  }
  func.func @transform_2(%arg0: i32, %arg1: i32) -> (i32, i32, i32, i32) {
    %c0_i32 = arith.constant 0 : i32
    %c0_i32_0 = arith.constant 0 : i32
    %c0_i32_1 = arith.constant 0 : i32
    return %arg0, %arg1, %c0_i32, %c0_i32_0 : i32, i32, i32, i32
  }
  func.func @transform_3(%arg0: i32, %arg1: i32) -> (i32, i32, i32, i32, i32) {
    %c0_i32 = arith.constant 0 : i32
    %c0_i32_0 = arith.constant 0 : i32
    %c0_i32_1 = arith.constant 0 : i32
    %c0_i32_2 = arith.constant 0 : i32
    return %c0_i32, %arg0, %arg1, %c0_i32_0, %c0_i32_1 : i32, i32, i32, i32, i32
  }
}

</mosaic_0001>

<llo_original>
// kernel: tpu_custom_call.1
$region0: #{tpu_custom_call.1}
  #allocation0 [shape = 'u32[]', space=smem, size = 0x4, offset = 0x4, fixed_abs, tag = 'smem constant byte address 0x4 - core index']
  #allocation1 [shape = 'u32[144,128]{1,0:T(1,128)}', space=vmem, size = 0x12000, scoped, tag = 'internal scratch']
  %s0 = inlined_call_operand.vmem [shape: f32[2,2,3,1,4], index: 0, kind: input, shape index: {}]
  %s1 = inlined_call_operand.vmem [shape: f32[2,3,4,3], index: 1, kind: input, shape index: {}]
  %s2 = inlined_call_operand.vmem [shape: f32[2,3,1,3], index: 2, kind: input, shape index: {}]
  %s3 = inlined_call_operand.hbm [shape: f32[2,2,3,1,3], index: 3, kind: output, shape index: {}]
  %s4 = sld [smem:[#allocation0]]
  $region79: #{tpu_custom_call.1} parent=0
    _
  %s6 = ssub.s32 1, %s4
  %s7 = scalar_select 0, %s6, %s4
  $region1: #{tpu_custom_call.1} parent=0
    #allocation2 [shape = 'u8[2048]{0}', space=vmem, size = 0x800, scoped, tag = 'input window, operand 0']
    #allocation3 [shape = 'u8[2048]{0}', space=vmem, size = 0x800, scoped, tag = 'output window, operand 0']
    #allocation4 [shape = 's32[2]{0}', space=sflag, size = 0x8, scoped, tag = 'scoped memory for tpu_custom_call.1']
    %8 = vsyncpa [#allocation4], 0
    %s9 = scalar_lea.sflag [#allocation4], 1
    %10 = vsyncpa %s9, 0
    loop: start=0, step=1, limit=8
    $region2: #{tpu_custom_call.1} parent=1 // loop_pre_header
      _
    $region3: #{tpu_custom_call.1} parent=1 // loop_header
      %s12 = sphi 0, %s16
      %p13 = scmp.ge.s32.totalorder %s12, 8
      %s19 = sphi 0, %s31
      %s20 = sphi 0, %s27
      %s21 = sphi 0, %s19
      %s22 = sphi 0, %s20
      %s23 = sphi 0, %s21
      %s24 = sphi 0, %s22
      %s36 = sphi 0, %s38
      %s39 = sphi 0, %s36
      %s40 = sphi 0, %s39
      %s56 = sphi 0, %s40
      %s64 = sphi 0, %s66
      %s67 = sphi 0, %s64
      %s68 = sphi 0, %s67
      %s84 = sphi 0, %s68
      %s92 = sphi 0, %s94
      %s95 = sphi 0, %s92
      %s96 = sphi 0, %s95
      %s112 = sphi 0, %s96
      %s120 = sphi 0, %s122
      %s123 = sphi 0, %s120
      %s124 = sphi 0, %s123
      %s140 = sphi 0, %s124
    $region4: #{tpu_custom_call.1} parent=1 // loop_header_branch
      %15 = sbr.rel (%p13) target = $region8
    $region5: #{tpu_custom_call.1} parent=1 // loop_body
      %s17 = ssub.s32 %s12, 1
      %s18 = ssub.s32 %s12, 2
      %s25 = sadd.s32 1, %s20
      %p26 = scmp.ge.s32.totalorder %s25, 3
      %s27 = scalar_select %p26, 0, %s25
      %s28 = sadd.s32 1, %s19
      %s29 = scalar_select %p26, %s28, %s19
      %p30 = scmp.ge.s32.totalorder %s29, 2
      %s31 = scalar_select %p30, 0, %s29
      %s32 = ssub.s32 %s19, %s31
      %s33 = ssub.s32 %s20, %s27
      %s34 = sor.u32 %s32, %s33
      %p35 = scmp.eq.s32.totalorder %s34, 0
      %s37 = sadd.s32 %s36, 1
      %s38 = scalar_select %p35, %s36, %s37
      %p41 = pneg %p35
      %p42 = scmp.eq.s32.totalorder %s12, 5
      %p43 = por %p41, %p42
      %p44 = scmp.ne.s32.totalorder %s36, %s39
      %p45 = scmp.eq.s32.totalorder %s12, 0
      %p46 = por %p44, %p45
      %p47 = scmp.ne.s32.totalorder %s36, %s39
      %p48 = scmp.eq.s32.totalorder %s17, 5
      %p49 = por %p47, %p48
      %p50 = scmp.ne.s32.totalorder %s39, %s40
      %p51 = scmp.eq.s32.totalorder %s17, 0
      %p52 = por %p50, %p51
      %p53 = scmp.ne.s32.totalorder %s39, %s40
      %p54 = scmp.eq.s32.totalorder %s18, 5
      %p55 = por %p53, %p54
      %p57 = scmp.ne.s32.totalorder %s40, %s56
      %p58 = scmp.eq.s32.totalorder %s18, 0
      %p59 = por %p57, %p58
      %s60 = ssub.s32 %s19, %s31
      %s61 = ssub.s32 %s20, %s27
      %s62 = sor.u32 %s60, %s61
      %p63 = scmp.eq.s32.totalorder %s62, 0
      %s65 = sadd.s32 %s64, 1
      %s66 = scalar_select %p63, %s64, %s65
      %p69 = pneg %p63
      %p70 = scmp.eq.s32.totalorder %s12, 5
      %p71 = por %p69, %p70
      %p72 = scmp.ne.s32.totalorder %s64, %s67
      %p73 = scmp.eq.s32.totalorder %s12, 0
      %p74 = por %p72, %p73
      %p75 = scmp.ne.s32.totalorder %s64, %s67
      %p76 = scmp.eq.s32.totalorder %s17, 5
      %p77 = por %p75, %p76
      %p78 = scmp.ne.s32.totalorder %s67, %s68
      %p79 = scmp.eq.s32.totalorder %s17, 0
      %p80 = por %p78, %p79
      %p81 = scmp.ne.s32.totalorder %s67, %s68
      %p82 = scmp.eq.s32.totalorder %s18, 5
      %p83 = por %p81, %p82
      %p85 = scmp.ne.s32.totalorder %s68, %s84
      %p86 = scmp.eq.s32.totalorder %s18, 0
      %p87 = por %p85, %p86
      %s88 = ssub.s32 %s19, %s31
      %s89 = ssub.s32 %s20, %s27
      %s90 = sor.u32 %s88, %s89
      %p91 = scmp.eq.s32.totalorder %s90, 0
      %s93 = sadd.s32 %s92, 1
      %s94 = scalar_select %p91, %s92, %s93
      %p97 = pneg %p91
      %p98 = scmp.eq.s32.totalorder %s12, 5
      %p99 = por %p97, %p98
      %p100 = scmp.ne.s32.totalorder %s92, %s95
      %p101 = scmp.eq.s32.totalorder %s12, 0
      %p102 = por %p100, %p101
      %p103 = scmp.ne.s32.totalorder %s92, %s95
      %p104 = scmp.eq.s32.totalorder %s17, 5
      %p105 = por %p103, %p104
      %p106 = scmp.ne.s32.totalorder %s95, %s96
      %p107 = scmp.eq.s32.totalorder %s17, 0
      %p108 = por %p106, %p107
      %p109 = scmp.ne.s32.totalorder %s95, %s96
      %p110 = scmp.eq.s32.totalorder %s18, 5
      %p111 = por %p109, %p110
      %p113 = scmp.ne.s32.totalorder %s96, %s112
      %p114 = scmp.eq.s32.totalorder %s18, 0
      %p115 = por %p113, %p114
      %s116 = ssub.s32 %s19, %s31
      %s117 = ssub.s32 %s20, %s27
      %s118 = sor.u32 %s116, %s117
      %p119 = scmp.eq.s32.totalorder %s118, 0
      %s121 = sadd.s32 %s120, 1
      %s122 = scalar_select %p119, %s120, %s121
      %p125 = pneg %p119
      %p126 = scmp.eq.s32.totalorder %s12, 5
      %p127 = por %p125, %p126
      %p128 = scmp.ne.s32.totalorder %s120, %s123
      %p129 = scmp.eq.s32.totalorder %s12, 0
      %p130 = por %p128, %p129
      %p131 = scmp.ne.s32.totalorder %s120, %s123
      %p132 = scmp.eq.s32.totalorder %s17, 5
      %p133 = por %p131, %p132
      %p134 = scmp.ne.s32.totalorder %s123, %s124
      %p135 = scmp.eq.s32.totalorder %s17, 0
      %p136 = por %p134, %p135
      %p137 = scmp.ne.s32.totalorder %s123, %s124
      %p138 = scmp.eq.s32.totalorder %s18, 5
      %p139 = por %p137, %p138
      %p141 = scmp.ne.s32.totalorder %s124, %s140
      %p142 = scmp.eq.s32.totalorder %s18, 0
      %p143 = por %p141, %p142
      %p144 = scmp.le.s32.totalorder 1, %s12
      %p145 = scmp.lt.s32.totalorder %s12, 7
      %p146 = pnand %p144, %p145
      %p147 = pneg %p146
      // Predicated region
      $region9: #{tpu_custom_call.1} parent=5 // pred_check
        _
      $region10: #{tpu_custom_call.1} parent=5 // pred_check_branch
        %149 = sbr.rel (%p146) target = $region12
      $region11: #{tpu_custom_call.1} parent=5 // pred_region
        %s150 = ssub.s32 %s12, 1
      $region12: #{tpu_custom_call.1} parent=5 // pred_fallthru
        _
      %p151 = scmp.lt.s32.totalorder %s12, 6
      // Predicated region
      $region13: #{tpu_custom_call.1} parent=5 // pred_check
        %p152 = pneg %p151
      $region14: #{tpu_custom_call.1} parent=5 // pred_check_branch
        %154 = sbr.rel (%p152) target = $region16
      $region15: #{tpu_custom_call.1} parent=5 // pred_region
        // Predicated region
        $region17: #{tpu_custom_call.1} parent=15 // pred_check
          %p155 = pneg %p46
        $region18: #{tpu_custom_call.1} parent=15 // pred_check_branch
          %157 = sbr.rel (%p155) target = $region20
        $region19: #{tpu_custom_call.1} parent=15 // pred_region
          %s158 = sand.u32 %s36, 1
          %s159 = sand.u32 %s36, 1
          %s160 = smul.addr %s159, 2
          %s161 = scalar_lea.vmem [#allocation2], %s160
          %s162 = smul.addr %s19, 3
          %s163 = sadd.s32 %s20, %s162
          %s164 = scalar_lea.vmem %s0, %s163
          // Predicated region
          $region21: #{tpu_custom_call.1} parent=19 // pred_check
            _
          $region22: #{tpu_custom_call.1} parent=19 // pred_check_branch
            %166 = sbr.rel (0) target = $region24
          $region23: #{tpu_custom_call.1} parent=19 // pred_region
            // Predicated region
            $region25: #{tpu_custom_call.1} parent=23 // pred_check
              _
            $region26: #{tpu_custom_call.1} parent=23 // pred_check_branch
              %168 = sbr.rel target = $region28
            $region27: #{tpu_custom_call.1} parent=23 // pred_region
              // Predicated region
              $region40: #{tpu_custom_call.1} parent=27 // pred_check
                _
              $region41: #{tpu_custom_call.1} parent=27 // pred_check_branch
                %186 = sbr.rel (0) target = $region43
              $region42: #{tpu_custom_call.1} parent=27 // pred_region
                %s188 = ssub.s32 2, 1
                loop: start=0, step=1, limit=1
                $region44: #{tpu_custom_call.1} parent=42 // loop_pre_header
                  _
                $region45: #{tpu_custom_call.1} parent=42 // loop_header
                  %s190 = sphi 0, %s194
                  %p191 = scmp.ge.s32.totalorder %s190, 1
                  %s195 = sphi %s164, %s164
                  %s196 = sphi %s161, %s161
                $region46: #{tpu_custom_call.1} parent=42 // loop_header_branch
                  %193 = sbr.rel (%p191) target = $region50
                $region47: #{tpu_custom_call.1} parent=42 // loop_body
                  %v197 = vld [vmem:[%s195] sm:%s188]
                  %198 = vst [vmem:[%s196] sm:%s188] %v197
                  %v199 = vld [vmem:[%s195 + $0x6] sm:%s188]
                  %200 = vst [vmem:[%s196 + $0x1] sm:%s188] %v199
                $region48: #{tpu_custom_call.1} parent=42 // loop_footer
                  %s194 = sadd.s32 1, %s190
                $region49: #{tpu_custom_call.1} parent=42 // loop_footer_branch
                  %189 = sbr.rel target = $region45
                $region50: #{tpu_custom_call.1} parent=42 // loop_exit
                  _
              $region43: #{tpu_custom_call.1} parent=27 // pred_fallthru
                _
            $region28: #{tpu_custom_call.1} parent=23 // pred_fallthru
              _
            // Predicated region
            $region29: #{tpu_custom_call.1} parent=23 // pred_check
              _
            $region30: #{tpu_custom_call.1} parent=23 // pred_check_branch
              %170 = sbr.rel (0) target = $region32
            $region31: #{tpu_custom_call.1} parent=23 // pred_region
              %s172 = ssub.s32 2, 1
              loop: start=0, step=1, limit=1
              $region33: #{tpu_custom_call.1} parent=31 // loop_pre_header
                _
              $region34: #{tpu_custom_call.1} parent=31 // loop_header
                %s174 = sphi 0, %s178
                %p175 = scmp.ge.s32.totalorder %s174, 1
                %s179 = sphi %s164, %s164
                %s180 = sphi %s161, %s161
              $region35: #{tpu_custom_call.1} parent=31 // loop_header_branch
                %177 = sbr.rel (%p175) target = $region39
              $region36: #{tpu_custom_call.1} parent=31 // loop_body
                %v181 = vld [vmem:[%s179] sm:%s172]
                %182 = vst [vmem:[%s180] sm:%s172] %v181
                %v183 = vld [vmem:[%s179 + $0x6] sm:%s172]
                %184 = vst [vmem:[%s180 + $0x1] sm:%s172] %v183
              $region37: #{tpu_custom_call.1} parent=31 // loop_footer
                %s178 = sadd.s32 1, %s174
              $region38: #{tpu_custom_call.1} parent=31 // loop_footer_branch
                %173 = sbr.rel target = $region34
              $region39: #{tpu_custom_call.1} parent=31 // loop_exit
                _
            $region32: #{tpu_custom_call.1} parent=23 // pred_fallthru
              _
          $region24: #{tpu_custom_call.1} parent=19 // pred_fallthru
            _
          %201 = vnop
        $region20: #{tpu_custom_call.1} parent=15 // pred_fallthru
          _
        // Predicated region
        $region51: #{tpu_custom_call.1} parent=15 // pred_check
          %p202 = pneg %p74
        $region52: #{tpu_custom_call.1} parent=15 // pred_check_branch
          %204 = sbr.rel (%p202) target = $region54
        $region53: #{tpu_custom_call.1} parent=15 // pred_region
          %p205 = scmp.lt.s32.totalorder %s19, 1
          %s206 = scalar_select %p205, %s19, 1
          %p207 = scmp.lt.s32.totalorder %s20, 2
          %s208 = scalar_select %p207, %s20, 2
          %s209 = smul.addr %s206, 3
          %s210 = sadd.s32 %s208, %s209
          %s211 = smul.addr %s210, 4
          %s212 = scalar_lea.vmem %s1, %s211
        $region54: #{tpu_custom_call.1} parent=15 // pred_fallthru
          _
        // Predicated region
        $region55: #{tpu_custom_call.1} parent=15 // pred_check
          %p213 = pneg %p102
        $region56: #{tpu_custom_call.1} parent=15 // pred_check_branch
          %215 = sbr.rel (%p213) target = $region58
        $region57: #{tpu_custom_call.1} parent=15 // pred_region
          %p216 = scmp.lt.s32.totalorder %s19, 1
          %s217 = scalar_select %p216, %s19, 1
          %p218 = scmp.lt.s32.totalorder %s20, 2
          %s219 = scalar_select %p218, %s20, 2
          %s220 = smul.addr %s217, 3
          %s221 = sadd.s32 %s219, %s220
          %s222 = scalar_lea.vmem %s2, %s221
        $region58: #{tpu_custom_call.1} parent=15 // pred_fallthru
          _
      $region16: #{tpu_custom_call.1} parent=5 // pred_fallthru
        _
      %p223 = scmp.le.s32.totalorder 1, %s12
      %p224 = scmp.lt.s32.totalorder %s12, 7
      %p225 = pnand %p223, %p224
      %p226 = pneg %p225
      // Predicated region
      $region59: #{tpu_custom_call.1} parent=5 // pred_check
        _
      $region60: #{tpu_custom_call.1} parent=5 // pred_check_branch
        %228 = sbr.rel (%p225) target = $region62
      $region61: #{tpu_custom_call.1} parent=5 // pred_region
        %s229 = ssub.s32 %s12, 1
        %s230 = sand.u32 %s39, 1
        %s231 = sand.u32 %s39, 1
        %s232 = smul.addr %s231, 2
        %s233 = scalar_lea.vmem [#allocation2], %s232
        // Predicated region
        $region63: #{tpu_custom_call.1} parent=61 // pred_check
          %p234 = pneg %p52
        $region64: #{tpu_custom_call.1} parent=61 // pred_check_branch
          %236 = sbr.rel (%p234) target = $region66
        $region65: #{tpu_custom_call.1} parent=61 // pred_region
          _
        $region66: #{tpu_custom_call.1} parent=61 // pred_fallthru
          _
        %s237 = sand.u32 %s39, 1
        %s238 = sand.u32 %s39, 1
        %s239 = smul.addr %s238, 2
        %s240 = scalar_lea.vmem [#allocation2], %s239
        %p241 = pneg %p52
        %p242 = pneg %p49
        %p243 = scmp.lt.s32.totalorder %s21, 1
        %s244 = scalar_select %p243, %s21, 1
        %p245 = scmp.lt.s32.totalorder %s22, 2
        %s246 = scalar_select %p245, %s22, 2
        %s247 = smul.addr %s244, 3
        %s248 = sadd.s32 %s246, %s247
        %s249 = smul.addr %s248, 4
        %s250 = scalar_lea.vmem %s1, %s249
        %p251 = pneg %p80
        %p252 = pneg %p77
        %p253 = scmp.lt.s32.totalorder %s21, 1
        %s254 = scalar_select %p253, %s21, 1
        %p255 = scmp.lt.s32.totalorder %s22, 2
        %s256 = scalar_select %p255, %s22, 2
        %s257 = smul.addr %s254, 3
        %s258 = sadd.s32 %s256, %s257
        %s259 = scalar_lea.vmem %s2, %s258
        %p260 = pneg %p108
        %p261 = pneg %p105
        %p262 = pneg %p136
        %p263 = pneg %p133
        %s264 = sand.u32 %s123, 1
        %s265 = scalar_lea.sflag [#allocation4], %s264
        %s266 = sand.u32 %s123, 1
        %s267 = smul.addr %s266, 2
        %s268 = scalar_lea.vmem [#allocation3], %s267
        %p269 = scmp.lt.s32.totalorder %s21, 1
        %s270 = scalar_select %p269, %s21, 1
        %p271 = scmp.lt.s32.totalorder %s22, 2
        %s272 = scalar_select %p271, %s22, 2
        %s273 = smul.addr %s270, 3
        %s274 = sadd.s32 %s272, %s273
        %s275 = smul.addr %s274, 4
        %s276 = scalar_lea.vmem %s1, %s275
        %p277 = scmp.lt.s32.totalorder %s21, 1
        %s278 = scalar_select %p277, %s21, 1
        %p279 = scmp.lt.s32.totalorder %s22, 2
        %s280 = scalar_select %p279, %s22, 2
        %s281 = smul.addr %s278, 3
        %s282 = sadd.s32 %s280, %s281
        %s283 = scalar_lea.vmem %s2, %s282
        %v284 = vld [vmem:[%s276] sm:$0xf]
        %v285 = vld [vmem:[%s283] sm:$0x1]
        %v286 = vld [vmem:[%s233] sm:$0x1]
        %vm287 = vcmask 31744
        %v289 = vsel %vm287, %v286, 0
        %vm291 = vcmask 1043456
        %v293 = vsel %vm291, %v284, 0
        %295 = vmatprep.subr.mxu0 0.0
        %296 = vmatpush1.msra.mxu0 0.0
        %297 = vmatprep.subr.mxu0 0.0
        %298 = vmatpush1.msra.mxu0 0.0
        %299 = vmatprep.subr.mxu0 0.0
        %300 = vmatpush1.msra.mxu0 0.0
        %301 = vmatprep.subr.mxu0 0.0
        %302 = vmatpush1.msra.mxu0 0.0
        %303 = vmatprep.subr.mxu0 0.0
        %304 = vmatpush1.msra.mxu0 0.0
        %305 = vmatprep.subr.mxu0 0.0
        %306 = vmatpush1.msra.mxu0 0.0
        %307 = vmatprep.subr.mxu0 0.0
        %308 = vmatpush1.msra.mxu0 0.0
        %309 = vmatprep.subr.mxu0 0.0
        %310 = vmatpush1.msra.mxu0 0.0
        %311 = vmatprep.subr.mxu0 0.0
        %312 = vmatpush1.msra.mxu0 0.0
        %313 = vmatprep.subr.mxu0 0.0
        %314 = vmatpush1.msra.mxu0 0.0
        %315 = vmatprep.subr.mxu0 0.0
        %316 = vmatpush1.msra.mxu0 0.0
        %317 = vmatprep.subr.mxu0 0.0
        %318 = vmatpush1.msra.mxu0 0.0
        %319 = vmatprep.subr.mxu0 0.0
        %320 = vmatpush1.msra.mxu0 0.0
        %321 = vmatprep.subr.mxu0 0.0
        %322 = vmatpush1.msra.mxu0 0.0
        %323 = vmatprep.subr.mxu0 0.0
        %324 = vmatpush1.msra.mxu0 0.0
        %325 = vmatprep.subr.mxu0 0.0
        %326 = vmatpush1.msra.mxu0 %v293
        %327 = vmatprep.subr.mxu0 0.0
        %328 = vmatpush2.msra.mxu0 0.0
        %329 = vmatprep.subr.mxu0 0.0
        %330 = vmatpush2.msra.mxu0 0.0
        %331 = vmatprep.subr.mxu0 0.0
        %332 = vmatpush2.msra.mxu0 0.0
        %333 = vmatprep.subr.mxu0 0.0
        %334 = vmatpush2.msra.mxu0 0.0
        %335 = vmatprep.subr.mxu0 0.0
        %336 = vmatpush2.msra.mxu0 0.0
        %337 = vmatprep.subr.mxu0 0.0
        %338 = vmatpush2.msra.mxu0 0.0
        %339 = vmatprep.subr.mxu0 0.0
        %340 = vmatpush2.msra.mxu0 0.0
        %341 = vmatprep.subr.mxu0 0.0
        %342 = vmatpush2.msra.mxu0 0.0
        %343 = vmatprep.subr.mxu0 0.0
        %344 = vmatpush2.msra.mxu0 0.0
        %345 = vmatprep.subr.mxu0 0.0
        %346 = vmatpush2.msra.mxu0 0.0
        %347 = vmatprep.subr.mxu0 0.0
        %348 = vmatpush2.msra.mxu0 0.0
        %349 = vmatprep.subr.mxu0 0.0
        %350 = vmatpush2.msra.mxu0 0.0
        %351 = vmatprep.subr.mxu0 0.0
        %352 = vmatpush2.msra.mxu0 0.0
        %353 = vmatprep.subr.mxu0 0.0
        %354 = vmatpush2.msra.mxu0 0.0
        %355 = vmatprep.subr.mxu0 0.0
        %356 = vmatpush2.msra.mxu0 0.0
        %357 = vmatprep.subr.mxu0 0.0
        %358 = vmatpush2.msra.mxu0 0.0
        %359 = vmatprep.mubr.f32.mxu0 0.0
        %360 = vmatmul.mubr.f32.gmra.mxu0 %v289
        %v361 = vpop.f32.mrf.mxu0
        %v362 = vadd.f32 %v285, %v361
        %v363 = vpop.f32.mrf.mxu0
        %364 = vdwg.mxu0
        %vm365 = vcmask 16384
        %366 = vst.msk [vmem:[%s268] sm:$0x1] %vm365, %v362
        %s367 = scalar_lea.vmem %s233, 1 [#allocation2]
        %v368 = vld [vmem:[%s367] sm:$0x1]
        %v370 = vsel %vm287, %v368, 0
        %372 = vmatprep.subr.mxu0 0.0
        %373 = vmatpush1.msra.mxu0 0.0
        %374 = vmatprep.subr.mxu0 0.0
        %375 = vmatpush1.msra.mxu0 0.0
        %376 = vmatprep.subr.mxu0 0.0
        %377 = vmatpush1.msra.mxu0 0.0
        %378 = vmatprep.subr.mxu0 0.0
        %379 = vmatpush1.msra.mxu0 0.0
        %380 = vmatprep.subr.mxu0 0.0
        %381 = vmatpush1.msra.mxu0 0.0
        %382 = vmatprep.subr.mxu0 0.0
        %383 = vmatpush1.msra.mxu0 0.0
        %384 = vmatprep.subr.mxu0 0.0
        %385 = vmatpush1.msra.mxu0 0.0
        %386 = vmatprep.subr.mxu0 0.0
        %387 = vmatpush1.msra.mxu0 0.0
        %388 = vmatprep.subr.mxu0 0.0
        %389 = vmatpush1.msra.mxu0 0.0
        %390 = vmatprep.subr.mxu0 0.0
        %391 = vmatpush1.msra.mxu0 0.0
        %392 = vmatprep.subr.mxu0 0.0
        %393 = vmatpush1.msra.mxu0 0.0
        %394 = vmatprep.subr.mxu0 0.0
        %395 = vmatpush1.msra.mxu0 0.0
        %396 = vmatprep.subr.mxu0 0.0
        %397 = vmatpush1.msra.mxu0 0.0
        %398 = vmatprep.subr.mxu0 0.0
        %399 = vmatpush1.msra.mxu0 0.0
        %400 = vmatprep.subr.mxu0 0.0
        %401 = vmatpush1.msra.mxu0 0.0
        %402 = vmatprep.subr.mxu0 0.0
        %403 = vmatpush1.msra.mxu0 %v293
        %404 = vmatprep.subr.mxu0 0.0
        %405 = vmatpush2.msra.mxu0 0.0
        %406 = vmatprep.subr.mxu0 0.0
        %407 = vmatpush2.msra.mxu0 0.0
        %408 = vmatprep.subr.mxu0 0.0
        %409 = vmatpush2.msra.mxu0 0.0
        %410 = vmatprep.subr.mxu0 0.0
        %411 = vmatpush2.msra.mxu0 0.0
        %412 = vmatprep.subr.mxu0 0.0
        %413 = vmatpush2.msra.mxu0 0.0
        %414 = vmatprep.subr.mxu0 0.0
        %415 = vmatpush2.msra.mxu0 0.0
        %416 = vmatprep.subr.mxu0 0.0
        %417 = vmatpush2.msra.mxu0 0.0
        %418 = vmatprep.subr.mxu0 0.0
        %419 = vmatpush2.msra.mxu0 0.0
        %420 = vmatprep.subr.mxu0 0.0
        %421 = vmatpush2.msra.mxu0 0.0
        %422 = vmatprep.subr.mxu0 0.0
        %423 = vmatpush2.msra.mxu0 0.0
        %424 = vmatprep.subr.mxu0 0.0
        %425 = vmatpush2.msra.mxu0 0.0
        %426 = vmatprep.subr.mxu0 0.0
        %427 = vmatpush2.msra.mxu0 0.0
        %428 = vmatprep.subr.mxu0 0.0
        %429 = vmatpush2.msra.mxu0 0.0
        %430 = vmatprep.subr.mxu0 0.0
        %431 = vmatpush2.msra.mxu0 0.0
        %432 = vmatprep.subr.mxu0 0.0
        %433 = vmatpush2.msra.mxu0 0.0
        %434 = vmatprep.subr.mxu0 0.0
        %435 = vmatpush2.msra.mxu0 0.0
        %436 = vmatprep.mubr.f32.mxu0 0.0
        %437 = vmatmul.mubr.f32.gmra.mxu0 %v370
        %v438 = vpop.f32.mrf.mxu0
        %v439 = vadd.f32 %v285, %v438
        %v440 = vpop.f32.mrf.mxu0
        %441 = vdwg.mxu0
        %s442 = scalar_lea.vmem %s268, 1 [#allocation3]
        %443 = vst.msk [vmem:[%s442] sm:$0x1] %vm365, %v439
        %s444 = sand.u32 %s123, 1
        %s445 = scalar_lea.sflag [#allocation4], %s444
        %s446 = sand.u32 %s123, 1
        %s447 = smul.addr %s446, 2
        %s448 = scalar_lea.vmem [#allocation3], %s447
        // Predicated region
        $region67: #{tpu_custom_call.1} parent=61 // pred_check
          %p449 = pneg %p133
        $region68: #{tpu_custom_call.1} parent=61 // pred_check_branch
          %451 = sbr.rel (%p449) target = $region70
        $region69: #{tpu_custom_call.1} parent=61 // pred_region
          %s453 = ssub.s32 32, 32
          %454 = vsyncadd %s445, %s453
          %s455 = smul.addr %s21, 3
          %s456 = sadd.s32 %s22, %s455
          %s457 = smul.addr %s456, 16
          %s458 = scalar_lea.hbm %s3, %s457
          %s459 = sshll.u32 %s448, 4
          %s460 = int_to_ptr.vmem [resolvable:$true] %s459
          %465 = dma.vmem_to_hbm [thread:$0]  %s460, 32, %s458, %s445, 16, 96, 1
        $region70: #{tpu_custom_call.1} parent=61 // pred_fallthru
          _
      $region62: #{tpu_custom_call.1} parent=5 // pred_fallthru
        _
      %p466 = scmp.le.s32.totalorder 2, %s12
      // Predicated region
      $region71: #{tpu_custom_call.1} parent=5 // pred_check
        %p467 = pneg %p466
      $region72: #{tpu_custom_call.1} parent=5 // pred_check_branch
        %469 = sbr.rel (%p467) target = $region74
      $region73: #{tpu_custom_call.1} parent=5 // pred_region
        %s470 = ssub.s32 %s12, 2
        // Predicated region
        $region75: #{tpu_custom_call.1} parent=73 // pred_check
          %p471 = pneg %p139
        $region76: #{tpu_custom_call.1} parent=73 // pred_check_branch
          %473 = sbr.rel (%p471) target = $region78
        $region77: #{tpu_custom_call.1} parent=73 // pred_region
          %s474 = sand.u32 %s124, 1
          %s475 = scalar_lea.sflag [#allocation4], %s474
          %s476 = sand.u32 %s124, 1
          %s477 = smul.addr %s476, 2
          %s478 = scalar_lea.vmem [#allocation3], %s477
          %479 = dma.done %s475, 32
        $region78: #{tpu_custom_call.1} parent=73 // pred_fallthru
          _
      $region74: #{tpu_custom_call.1} parent=5 // pred_fallthru
        _
    $region6: #{tpu_custom_call.1} parent=1 // loop_footer
      %s16 = sadd.s32 1, %s12
    $region7: #{tpu_custom_call.1} parent=1 // loop_footer_branch
      %11 = sbr.rel target = $region3
    $region8: #{tpu_custom_call.1} parent=1 // loop_exit
      _
    %480 = vsyncpa [#allocation4], 1
    %s481 = scalar_lea.sflag [#allocation4], 1
    %482 = vsyncpa %s481, 1

</llo_original>
